<compile_context>
chip_gen: v7x
topology: tpu7x:2x2x1
jax: 0.10.0
libtpu: 0.0.40
codegen_flags: <defaults>
</compile_context>

<pallas_src>
import math

import jax
import jax.numpy as jnp
from jax.experimental import pallas as pl
from jax.experimental.pallas import tpu as pltpu


def time_embedding_kernel(t_ref, freq_ref, w1s_ref, w1c_ref, b1_ref, w2_ref,
                          b2_ref, out_ref):
    # t_ref:    (tb, 1)         f32
    # freq_ref: (1, half_dim)   f32
    # w1s_ref:  (half_dim, C)   bf16   (rows of w1 multiplying sin(emb))
    # w1c_ref:  (half_dim, C)   bf16   (rows of w1 multiplying cos(emb))
    # b1_ref:   (1, C)          f32
    # w2_ref:   (C, C)          bf16
    # b2_ref:   (1, C)          f32
    # out_ref:  (tb, C)         f32

    # Sinusoidal embedding: (tb, 1) * (1, half_dim) -> (tb, half_dim), f32.
    emb = t_ref[...] * freq_ref[...]
    sin_e = jnp.sin(emb)
    cos_e = jnp.cos(emb)

    # lin1 without the lane-axis concat: two MXU pushes, f32 accumulate.
    h = (
        jnp.dot(sin_e.astype(jnp.bfloat16), w1s_ref[...],
                preferred_element_type=jnp.float32)
        + jnp.dot(cos_e.astype(jnp.bfloat16), w1c_ref[...],
                  preferred_element_type=jnp.float32)
        + b1_ref[...]
    )

    # SiLU: h * sigmoid(h); sigmoid via exp + approx reciprocal (EUP path).
    h = h * pl.reciprocal(1.0 + jnp.exp(-h), approx=True)

    # lin2
    out_ref[...] = (
        jnp.dot(h.astype(jnp.bfloat16), w2_ref[...],
                preferred_element_type=jnp.float32)
        + b2_ref[...]
    )


def time_embedding(t, freq, w1, b1, w2, b2, *, block_b=256):
    """t: (B,) float32.  Returns (B, n_channels) float32.

    w1: (n_channels//4, n_channels), w2: (n_channels, n_channels), both stored
    transposed relative to PyTorch (i.e. (in_features, out_features)).
    """
    B = t.shape[0]
    half_dim = freq.shape[0]
    C = w2.shape[1]

    # Batch tile: multiple of 8 rows, no larger than the (rounded-up) batch.
    block_b = max(8, min(block_b, ((B + 7) // 8) * 8))
    B_pad = pl.cdiv(B, block_b) * block_b

    t2d = t.astype(jnp.float32).reshape(B, 1)
    if B_pad != B:
        t2d = jnp.pad(t2d, ((0, B_pad - B), (0, 0)))

    freq2d = freq.astype(jnp.float32).reshape(1, half_dim)
    b1_2d = b1.astype(jnp.float32).reshape(1, C)
    b2_2d = b2.astype(jnp.float32).reshape(1, C)

    # Split w1 into rows hitting sin(emb) vs cos(emb); ship matmul weights as
    # bf16 (halves the weight DMA, full MXU rate, f32 accumulation).
    w1_sin = w1[:half_dim].astype(jnp.bfloat16)
    w1_cos = w1[half_dim:].astype(jnp.bfloat16)
    w2_bf16 = w2.astype(jnp.bfloat16)

    grid = (B_pad // block_b,)

    out = pl.pallas_call(
        time_embedding_kernel,
        out_shape=jax.ShapeDtypeStruct((B_pad, C), jnp.float32),
        grid_spec=pltpu.PrefetchScalarGridSpec(
            num_scalar_prefetch=0,
            grid=grid,
            in_specs=[
                pl.BlockSpec((block_b, 1), lambda i: (i, 0)),       # t
                pl.BlockSpec((1, half_dim), lambda i: (0, 0)),      # freq
                pl.BlockSpec((half_dim, C), lambda i: (0, 0)),      # w1_sin
                pl.BlockSpec((half_dim, C), lambda i: (0, 0)),      # w1_cos
                pl.BlockSpec((1, C), lambda i: (0, 0)),             # b1
                pl.BlockSpec((C, C), lambda i: (0, 0)),             # w2
                pl.BlockSpec((1, C), lambda i: (0, 0)),             # b2
            ],
            out_specs=pl.BlockSpec((block_b, C), lambda i: (i, 0)),
        ),
        compiler_params=pltpu.CompilerParams(
            dimension_semantics=("parallel",)),
    )(t2d, freq2d, w1_sin, w1_cos, b1_2d, w2_bf16, b2_2d)

    return out[:B] if B_pad != B else out


def make_params(n_channels, key):
    """Deterministic synthetic parameters matching nn.Linear shapes."""
    in1 = n_channels // 4
    k1, k2, k3, k4 = jax.random.split(key, 4)
    # PyTorch Linear default init: U(-1/sqrt(fan_in), 1/sqrt(fan_in))
    lim1 = 1.0 / math.sqrt(in1)
    lim2 = 1.0 / math.sqrt(n_channels)
    # Stored transposed: (in_features, out_features)
    w1 = jax.random.uniform(k1, (in1, n_channels), jnp.float32, -lim1, lim1)
    b1 = jax.random.uniform(k2, (n_channels,), jnp.float32, -lim1, lim1)
    w2 = jax.random.uniform(k3, (n_channels, n_channels), jnp.float32, -lim2, lim2)
    b2 = jax.random.uniform(k4, (n_channels,), jnp.float32, -lim2, lim2)
    return w1, b1, w2, b2


def make_freq(n_channels):
    half_dim = n_channels // 8
    c = math.log(10000.0) / (half_dim - 1)
    return jnp.exp(jnp.arange(half_dim, dtype=jnp.float32) * -c)


def reference(t, freq, w1, b1, w2, b2):
    """Pure-JAX reference matching the kernel's precision policy
    (bf16 matmul operands, f32 accumulate)."""
    emb = t.astype(jnp.float32)[:, None] * freq[None, :]
    x = jnp.concatenate([jnp.sin(emb), jnp.cos(emb)], axis=1)
    h = jnp.dot(x.astype(jnp.bfloat16), w1.astype(jnp.bfloat16),
                preferred_element_type=jnp.float32) + b1
    h = h * jax.nn.sigmoid(h)
    return jnp.dot(h.astype(jnp.bfloat16), w2.astype(jnp.bfloat16),
                   preferred_element_type=jnp.float32) + b2


if __name__ == "__main__":
    n_channels = 128     # multiple of 128 -> lane-dense output stores
    batch = 24           # 3 grid steps of 8 rows each

    key = jax.random.PRNGKey(0)
    kt, kp = jax.random.split(key)
    t = jax.random.uniform(kt, (batch,), jnp.float32, 0.0, 1000.0)

    w1, b1, w2, b2 = make_params(n_channels, kp)
    freq = make_freq(n_channels)

    out = time_embedding(t, freq, w1, b1, w2, b2, block_b=8)
    out = jax.block_until_ready(out)

    ref = reference(t, freq, w1, b1, w2, b2)
    assert out.shape == (batch, n_channels)
    assert jnp.allclose(out, ref, atol=1e-2, rtol=1e-2), (
        float(jnp.max(jnp.abs(out - ref))))

    print("KERNEL_OK")
</pallas_src>

<mosaic_0001>
module attributes {stable_mosaic.version = 11 : i64} {
  func.func @time_embedding_kernel(%arg0: i32, %arg1: memref<8x1xf32, #tpu.memory_space<vmem>>, %arg2: memref<1x16xf32, #tpu.memory_space<vmem>>, %arg3: memref<16x128xbf16, #tpu.memory_space<vmem>>, %arg4: memref<16x128xbf16, #tpu.memory_space<vmem>>, %arg5: memref<1x128xf32, #tpu.memory_space<vmem>>, %arg6: memref<128x128xbf16, #tpu.memory_space<vmem>>, %arg7: memref<1x128xf32, #tpu.memory_space<vmem>>, %arg8: memref<8x128xf32, #tpu.memory_space<vmem>>) attributes {dimension_semantics = [#tpu.dimension_semantics<parallel>], iteration_bounds = array<i64: 3>, scalar_prefetch = 0 : i64, scratch_operands = 0 : i64, tpu.core_type = #tpu.core_type<tc>, window_params = [{transform_indices = @transform_0, window_bounds = array<i64: 8, 1>}, {pipeline_mode = #tpu.pipeline_mode<synchronous>, transform_indices = @transform_1, window_bounds = array<i64: 1, 16>}, {pipeline_mode = #tpu.pipeline_mode<synchronous>, transform_indices = @transform_2, window_bounds = array<i64: 16, 128>}, {pipeline_mode = #tpu.pipeline_mode<synchronous>, transform_indices = @transform_3, window_bounds = array<i64: 16, 128>}, {pipeline_mode = #tpu.pipeline_mode<synchronous>, transform_indices = @transform_4, window_bounds = array<i64: 1, 128>}, {pipeline_mode = #tpu.pipeline_mode<synchronous>, transform_indices = @transform_5, window_bounds = array<i64: 128, 128>}, {pipeline_mode = #tpu.pipeline_mode<synchronous>, transform_indices = @transform_6, window_bounds = array<i64: 1, 128>}, {transform_indices = @transform_7, window_bounds = array<i64: 8, 128>}]} {
    %c0 = arith.constant 0 : index
    %c0_0 = arith.constant 0 : index
    %0 = vector.load %arg1[%c0, %c0_0] : memref<8x1xf32, #tpu.memory_space<vmem>>, vector<8x1xf32>
    %c0_1 = arith.constant 0 : index
    %c0_2 = arith.constant 0 : index
    %1 = vector.load %arg2[%c0_1, %c0_2] : memref<1x16xf32, #tpu.memory_space<vmem>>, vector<1x16xf32>
    %2 = vector.broadcast %0 : vector<8x1xf32> to vector<8x16xf32>
    %3 = vector.broadcast %1 : vector<1x16xf32> to vector<8x16xf32>
    %4 = arith.mulf %2, %3 : vector<8x16xf32>
    %5 = math.sin %4 : vector<8x16xf32>
    %6 = math.cos %4 : vector<8x16xf32>
    %7 = arith.truncf %5 : vector<8x16xf32> to vector<8x16xbf16>
    %c0_3 = arith.constant 0 : index
    %c0_4 = arith.constant 0 : index
    %8 = vector.load %arg3[%c0_3, %c0_4] : memref<16x128xbf16, #tpu.memory_space<vmem>>, vector<16x128xbf16>
    %cst = arith.constant dense<0.000000e+00> : vector<8x128xf32>
    %9 = tpu.matmul %7, %8, %cst {dimension_numbers = #tpu.dot_dimension_numbers<[1], [0], [0], [1], [0, 0, 1, 1], [], []>} : vector<8x16xbf16>, vector<16x128xbf16>, vector<8x128xf32> -> vector<8x128xf32>
    %10 = arith.truncf %6 : vector<8x16xf32> to vector<8x16xbf16>
    %c0_5 = arith.constant 0 : index
    %c0_6 = arith.constant 0 : index
    %11 = vector.load %arg4[%c0_5, %c0_6] : memref<16x128xbf16, #tpu.memory_space<vmem>>, vector<16x128xbf16>
    %cst_7 = arith.constant dense<0.000000e+00> : vector<8x128xf32>
    %12 = tpu.matmul %10, %11, %cst_7 {dimension_numbers = #tpu.dot_dimension_numbers<[1], [0], [0], [1], [0, 0, 1, 1], [], []>} : vector<8x16xbf16>, vector<16x128xbf16>, vector<8x128xf32> -> vector<8x128xf32>
    %13 = arith.addf %9, %12 : vector<8x128xf32>
    %c0_8 = arith.constant 0 : index
    %c0_9 = arith.constant 0 : index
    %14 = vector.load %arg5[%c0_8, %c0_9] : memref<1x128xf32, #tpu.memory_space<vmem>>, vector<1x128xf32>
    %15 = vector.broadcast %14 : vector<1x128xf32> to vector<8x128xf32>
    %16 = arith.addf %13, %15 : vector<8x128xf32>
    %cst_10 = arith.constant 0.000000e+00 : f32
    %17 = vector.broadcast %cst_10 : f32 to vector<8x128xf32>
    %18 = arith.subf %17, %16 : vector<8x128xf32>
    %19 = math.exp %18 : vector<8x128xf32>
    %cst_11 = arith.constant 1.000000e+00 : f32
    %20 = vector.broadcast %cst_11 : f32 to vector<8x128xf32>
    %21 = arith.addf %20, %19 : vector<8x128xf32>
    %22 = tpu.reciprocal %21 {approx = true} : vector<8x128xf32> -> vector<8x128xf32>
    %23 = arith.mulf %16, %22 : vector<8x128xf32>
    %24 = arith.truncf %23 : vector<8x128xf32> to vector<8x128xbf16>
    %c0_12 = arith.constant 0 : index
    %c0_13 = arith.constant 0 : index
    %25 = vector.load %arg6[%c0_12, %c0_13] : memref<128x128xbf16, #tpu.memory_space<vmem>>, vector<128x128xbf16>
    %cst_14 = arith.constant dense<0.000000e+00> : vector<8x128xf32>
    %26 = tpu.matmul %24, %25, %cst_14 {dimension_numbers = #tpu.dot_dimension_numbers<[1], [0], [0], [1], [0, 0, 1, 1], [], []>} : vector<8x128xbf16>, vector<128x128xbf16>, vector<8x128xf32> -> vector<8x128xf32>
    %c0_15 = arith.constant 0 : index
    %c0_16 = arith.constant 0 : index
    %27 = vector.load %arg7[%c0_15, %c0_16] : memref<1x128xf32, #tpu.memory_space<vmem>>, vector<1x128xf32>
    %28 = vector.broadcast %27 : vector<1x128xf32> to vector<8x128xf32>
    %29 = arith.addf %26, %28 : vector<8x128xf32>
    %c0_17 = arith.constant 0 : index
    %c0_18 = arith.constant 0 : index
    %30 = vector.load %arg8[%c0_17, %c0_18] : memref<8x128xf32, #tpu.memory_space<vmem>>, vector<8x128xf32>
    tpu.vector_store %arg8[%c0_17, %c0_18], %29 {strides = array<i32>} : memref<8x128xf32, #tpu.memory_space<vmem>>, vector<8x128xf32>,
    return
  }
  func.func @transform_0(%arg0: i32) -> (i32, i32) {
    %c0_i32 = arith.constant 0 : i32
    %c0_i32_0 = arith.constant 0 : i32
    return %arg0, %c0_i32 : i32, i32
  }
  func.func @transform_1(%arg0: i32) -> (i32, i32) {
    %c0_i32 = arith.constant 0 : i32
    %c0_i32_0 = arith.constant 0 : i32
    %c0_i32_1 = arith.constant 0 : i32
    return %c0_i32, %c0_i32_0 : i32, i32
  }
  func.func @transform_2(%arg0: i32) -> (i32, i32) {
    %c0_i32 = arith.constant 0 : i32
    %c0_i32_0 = arith.constant 0 : i32
    %c0_i32_1 = arith.constant 0 : i32
    return %c0_i32, %c0_i32_0 : i32, i32
  }
  func.func @transform_3(%arg0: i32) -> (i32, i32) {
    %c0_i32 = arith.constant 0 : i32
    %c0_i32_0 = arith.constant 0 : i32
    %c0_i32_1 = arith.constant 0 : i32
    return %c0_i32, %c0_i32_0 : i32, i32
  }
  func.func @transform_4(%arg0: i32) -> (i32, i32) {
    %c0_i32 = arith.constant 0 : i32
    %c0_i32_0 = arith.constant 0 : i32
    %c0_i32_1 = arith.constant 0 : i32
    return %c0_i32, %c0_i32_0 : i32, i32
  }
  func.func @transform_5(%arg0: i32) -> (i32, i32) {
    %c0_i32 = arith.constant 0 : i32
    %c0_i32_0 = arith.constant 0 : i32
    %c0_i32_1 = arith.constant 0 : i32
    return %c0_i32, %c0_i32_0 : i32, i32
  }
  func.func @transform_6(%arg0: i32) -> (i32, i32) {
    %c0_i32 = arith.constant 0 : i32
    %c0_i32_0 = arith.constant 0 : i32
    %c0_i32_1 = arith.constant 0 : i32
    return %c0_i32, %c0_i32_0 : i32, i32
  }
  func.func @transform_7(%arg0: i32) -> (i32, i32) {
    %c0_i32 = arith.constant 0 : i32
    %c0_i32_0 = arith.constant 0 : i32
    return %arg0, %c0_i32 : i32, i32
  }
}

</mosaic_0001>

<llo_original>
// kernel: tpu_custom_call.1
$region0: #{tpu_custom_call.1}
  #allocation0 [shape = 'u32[]', space=smem, size = 0x4, offset = 0x4, fixed_abs, tag = 'smem constant byte address 0x4 - core index']
  #allocation1 [shape = 'u32[144,128]{1,0:T(1,128)}', space=vmem, size = 0x12000, scoped, tag = 'internal scratch']
  %s0 = inlined_call_operand.vmem [shape: f32[24,1], index: 0, kind: input, shape index: {}]
  %s1 = inlined_call_operand.vmem [shape: f32[1,16], index: 1, kind: input, shape index: {}]
  %s2 = inlined_call_operand.vmem [shape: bf16[16,128], index: 2, kind: input, shape index: {}]
  %s3 = inlined_call_operand.vmem [shape: bf16[16,128], index: 3, kind: input, shape index: {}]
  %s4 = inlined_call_operand.vmem [shape: f32[1,128], index: 4, kind: input, shape index: {}]
  %s5 = inlined_call_operand.hbm [shape: bf16[128,128], index: 5, kind: input, shape index: {}]
  %s6 = inlined_call_operand.vmem [shape: f32[1,128], index: 6, kind: input, shape index: {}]
  %s7 = inlined_call_operand.hbm [shape: f32[24,128], index: 7, kind: output, shape index: {}]
  %s8 = sld [smem:[#allocation0]]
  $region65: #{tpu_custom_call.1} parent=0
    _
  %s10 = ssub.s32 1, %s8
  %s11 = scalar_select 0, %s10, %s8
  $region1: #{tpu_custom_call.1} parent=0
    #allocation2 [shape = 'u8[32768]{0}', space=vmem, size = 0x8000, scoped, tag = 'input window, operand 5, single buffered']
    #allocation3 [shape = 's32[2]{0}', space=sflag, size = 0x8, scoped, tag = 'scoped memory for tpu_custom_call.1']
    #allocation4 [shape = 's32[2]{0}', space=sflag, size = 0x8, scoped, tag = 'scoped memory for tpu_custom_call.1']
    #allocation5 [shape = 'u8[8192]{0}', space=vmem, size = 0x2000, scoped, tag = 'output window, operand 0']
    %12 = vsyncpa [#allocation3], 0
    %13 = vsyncpa [#allocation4], 0
    %s14 = scalar_lea.sflag [#allocation4], 1
    %15 = vsyncpa %s14, 0
    loop: start=0, step=1, limit=5
    $region2: #{tpu_custom_call.1} parent=1 // loop_pre_header
      _
    $region3: #{tpu_custom_call.1} parent=1 // loop_header
      %s17 = sphi 0, %s21
      %p18 = scmp.ge.s32.totalorder %s17, 5
      %s27 = sphi 0, %s29
      %s30 = sphi 0, %s27
      %s31 = sphi 0, %s30
      %s47 = sphi 0, %s31
      %s51 = sphi 0, %s51
      %s53 = sphi 0, %s51
      %s54 = sphi 0, %s53
      %s68 = sphi 0, %s54
      %s72 = sphi 0, %s72
      %s74 = sphi 0, %s72
      %s75 = sphi 0, %s74
      %s89 = sphi 0, %s75
      %s93 = sphi 0, %s93
      %s95 = sphi 0, %s93
      %s96 = sphi 0, %s95
      %s110 = sphi 0, %s96
      %s114 = sphi 0, %s114
      %s116 = sphi 0, %s114
      %s117 = sphi 0, %s116
      %s131 = sphi 0, %s117
      %s135 = sphi 0, %s135
      %s137 = sphi 0, %s135
      %s138 = sphi 0, %s137
      %s152 = sphi 0, %s138
      %s156 = sphi 0, %s156
      %s158 = sphi 0, %s156
      %s159 = sphi 0, %s158
      %s173 = sphi 0, %s159
      %s179 = sphi 0, %s181
      %s182 = sphi 0, %s179
      %s183 = sphi 0, %s182
      %s199 = sphi 0, %s183
    $region4: #{tpu_custom_call.1} parent=1 // loop_header_branch
      %20 = sbr.rel (%p18) target = $region8
    $region5: #{tpu_custom_call.1} parent=1 // loop_body
      %s22 = ssub.s32 %s17, 1
      %s23 = ssub.s32 %s17, 2
      %s24 = sadd.s32 %s17, 1
      %s25 = ssub.s32 %s17, %s24
      %p26 = scmp.eq.s32.totalorder %s25, 0
      %s28 = sadd.s32 %s27, 1
      %s29 = scalar_select %p26, %s27, %s28
      %p32 = pneg %p26
      %p33 = scmp.eq.s32.totalorder %s17, 2
      %p34 = por %p32, %p33
      %p35 = scmp.ne.s32.totalorder %s27, %s30
      %p36 = scmp.eq.s32.totalorder %s17, 0
      %p37 = por %p35, %p36
      %p38 = scmp.ne.s32.totalorder %s27, %s30
      %p39 = scmp.eq.s32.totalorder %s22, 2
      %p40 = por %p38, %p39
      %p41 = scmp.ne.s32.totalorder %s30, %s31
      %p42 = scmp.eq.s32.totalorder %s22, 0
      %p43 = por %p41, %p42
      %p44 = scmp.ne.s32.totalorder %s30, %s31
      %p45 = scmp.eq.s32.totalorder %s23, 2
      %p46 = por %p44, %p45
      %p48 = scmp.ne.s32.totalorder %s31, %s47
      %p49 = scmp.eq.s32.totalorder %s23, 0
      %p50 = por %p48, %p49
      %s52 = sadd.s32 %s51, 1
      %p55 = scmp.eq.s32.totalorder %s17, 2
      %p56 = scmp.ne.s32.totalorder %s51, %s53
      %p57 = scmp.eq.s32.totalorder %s17, 0
      %p58 = por %p56, %p57
      %p59 = scmp.ne.s32.totalorder %s51, %s53
      %p60 = scmp.eq.s32.totalorder %s22, 2
      %p61 = por %p59, %p60
      %p62 = scmp.ne.s32.totalorder %s53, %s54
      %p63 = scmp.eq.s32.totalorder %s22, 0
      %p64 = por %p62, %p63
      %p65 = scmp.ne.s32.totalorder %s53, %s54
      %p66 = scmp.eq.s32.totalorder %s23, 2
      %p67 = por %p65, %p66
      %p69 = scmp.ne.s32.totalorder %s54, %s68
      %p70 = scmp.eq.s32.totalorder %s23, 0
      %p71 = por %p69, %p70
      %s73 = sadd.s32 %s72, 1
      %p76 = scmp.eq.s32.totalorder %s17, 2
      %p77 = scmp.ne.s32.totalorder %s72, %s74
      %p78 = scmp.eq.s32.totalorder %s17, 0
      %p79 = por %p77, %p78
      %p80 = scmp.ne.s32.totalorder %s72, %s74
      %p81 = scmp.eq.s32.totalorder %s22, 2
      %p82 = por %p80, %p81
      %p83 = scmp.ne.s32.totalorder %s74, %s75
      %p84 = scmp.eq.s32.totalorder %s22, 0
      %p85 = por %p83, %p84
      %p86 = scmp.ne.s32.totalorder %s74, %s75
      %p87 = scmp.eq.s32.totalorder %s23, 2
      %p88 = por %p86, %p87
      %p90 = scmp.ne.s32.totalorder %s75, %s89
      %p91 = scmp.eq.s32.totalorder %s23, 0
      %p92 = por %p90, %p91
      %s94 = sadd.s32 %s93, 1
      %p97 = scmp.eq.s32.totalorder %s17, 2
      %p98 = scmp.ne.s32.totalorder %s93, %s95
      %p99 = scmp.eq.s32.totalorder %s17, 0
      %p100 = por %p98, %p99
      %p101 = scmp.ne.s32.totalorder %s93, %s95
      %p102 = scmp.eq.s32.totalorder %s22, 2
      %p103 = por %p101, %p102
      %p104 = scmp.ne.s32.totalorder %s95, %s96
      %p105 = scmp.eq.s32.totalorder %s22, 0
      %p106 = por %p104, %p105
      %p107 = scmp.ne.s32.totalorder %s95, %s96
      %p108 = scmp.eq.s32.totalorder %s23, 2
      %p109 = por %p107, %p108
      %p111 = scmp.ne.s32.totalorder %s96, %s110
      %p112 = scmp.eq.s32.totalorder %s23, 0
      %p113 = por %p111, %p112
      %s115 = sadd.s32 %s114, 1
      %p118 = scmp.eq.s32.totalorder %s17, 2
      %p119 = scmp.ne.s32.totalorder %s114, %s116
      %p120 = scmp.eq.s32.totalorder %s17, 0
      %p121 = por %p119, %p120
      %p122 = scmp.ne.s32.totalorder %s114, %s116
      %p123 = scmp.eq.s32.totalorder %s22, 2
      %p124 = por %p122, %p123
      %p125 = scmp.ne.s32.totalorder %s116, %s117
      %p126 = scmp.eq.s32.totalorder %s22, 0
      %p127 = por %p125, %p126
      %p128 = scmp.ne.s32.totalorder %s116, %s117
      %p129 = scmp.eq.s32.totalorder %s23, 2
      %p130 = por %p128, %p129
      %p132 = scmp.ne.s32.totalorder %s117, %s131
      %p133 = scmp.eq.s32.totalorder %s23, 0
      %p134 = por %p132, %p133
      %s136 = sadd.s32 %s135, 1
      %p139 = scmp.eq.s32.totalorder %s17, 2
      %p140 = scmp.ne.s32.totalorder %s135, %s137
      %p141 = scmp.eq.s32.totalorder %s17, 0
      %p142 = por %p140, %p141
      %p143 = scmp.ne.s32.totalorder %s135, %s137
      %p144 = scmp.eq.s32.totalorder %s22, 2
      %p145 = por %p143, %p144
      %p146 = scmp.ne.s32.totalorder %s137, %s138
      %p147 = scmp.eq.s32.totalorder %s22, 0
      %p148 = por %p146, %p147
      %p149 = scmp.ne.s32.totalorder %s137, %s138
      %p150 = scmp.eq.s32.totalorder %s23, 2
      %p151 = por %p149, %p150
      %p153 = scmp.ne.s32.totalorder %s138, %s152
      %p154 = scmp.eq.s32.totalorder %s23, 0
      %p155 = por %p153, %p154
      %s157 = sadd.s32 %s156, 1
      %p160 = scmp.eq.s32.totalorder %s17, 2
      %p161 = scmp.ne.s32.totalorder %s156, %s158
      %p162 = scmp.eq.s32.totalorder %s17, 0
      %p163 = por %p161, %p162
      %p164 = scmp.ne.s32.totalorder %s156, %s158
      %p165 = scmp.eq.s32.totalorder %s22, 2
      %p166 = por %p164, %p165
      %p167 = scmp.ne.s32.totalorder %s158, %s159
      %p168 = scmp.eq.s32.totalorder %s22, 0
      %p169 = por %p167, %p168
      %p170 = scmp.ne.s32.totalorder %s158, %s159
      %p171 = scmp.eq.s32.totalorder %s23, 2
      %p172 = por %p170, %p171
      %p174 = scmp.ne.s32.totalorder %s159, %s173
      %p175 = scmp.eq.s32.totalorder %s23, 0
      %p176 = por %p174, %p175
      %s177 = ssub.s32 %s17, %s24
      %p178 = scmp.eq.s32.totalorder %s177, 0
      %s180 = sadd.s32 %s179, 1
      %s181 = scalar_select %p178, %s179, %s180
      %p184 = pneg %p178
      %p185 = scmp.eq.s32.totalorder %s17, 2
      %p186 = por %p184, %p185
      %p187 = scmp.ne.s32.totalorder %s179, %s182
      %p188 = scmp.eq.s32.totalorder %s17, 0
      %p189 = por %p187, %p188
      %p190 = scmp.ne.s32.totalorder %s179, %s182
      %p191 = scmp.eq.s32.totalorder %s22, 2
      %p192 = por %p190, %p191
      %p193 = scmp.ne.s32.totalorder %s182, %s183
      %p194 = scmp.eq.s32.totalorder %s22, 0
      %p195 = por %p193, %p194
      %p196 = scmp.ne.s32.totalorder %s182, %s183
      %p197 = scmp.eq.s32.totalorder %s23, 2
      %p198 = por %p196, %p197
      %p200 = scmp.ne.s32.totalorder %s183, %s199
      %p201 = scmp.eq.s32.totalorder %s23, 0
      %p202 = por %p200, %p201
      %p203 = scmp.le.s32.totalorder 1, %s17
      %p204 = scmp.lt.s32.totalorder %s17, 4
      %p205 = pnand %p203, %p204
      %p206 = pneg %p205
      // Predicated region
      $region9: #{tpu_custom_call.1} parent=5 // pred_check
        _
      $region10: #{tpu_custom_call.1} parent=5 // pred_check_branch
        %208 = sbr.rel (%p205) target = $region12
      $region11: #{tpu_custom_call.1} parent=5 // pred_region
        %s209 = ssub.s32 %s17, 1
        // Predicated region
        $region13: #{tpu_custom_call.1} parent=11 // pred_check
          %p210 = pneg %p64
        $region14: #{tpu_custom_call.1} parent=11 // pred_check_branch
          %212 = sbr.rel (%p210) target = $region16
        $region15: #{tpu_custom_call.1} parent=11 // pred_region
          _
        $region16: #{tpu_custom_call.1} parent=11 // pred_fallthru
          _
        // Predicated region
        $region17: #{tpu_custom_call.1} parent=11 // pred_check
          %p213 = pneg %p85
        $region18: #{tpu_custom_call.1} parent=11 // pred_check_branch
          %215 = sbr.rel (%p213) target = $region20
        $region19: #{tpu_custom_call.1} parent=11 // pred_region
          _
        $region20: #{tpu_custom_call.1} parent=11 // pred_fallthru
          _
        // Predicated region
        $region21: #{tpu_custom_call.1} parent=11 // pred_check
          %p216 = pneg %p106
        $region22: #{tpu_custom_call.1} parent=11 // pred_check_branch
          %218 = sbr.rel (%p216) target = $region24
        $region23: #{tpu_custom_call.1} parent=11 // pred_region
          _
        $region24: #{tpu_custom_call.1} parent=11 // pred_fallthru
          _
        // Predicated region
        $region25: #{tpu_custom_call.1} parent=11 // pred_check
          %p219 = pneg %p127
        $region26: #{tpu_custom_call.1} parent=11 // pred_check_branch
          %221 = sbr.rel (%p219) target = $region28
        $region27: #{tpu_custom_call.1} parent=11 // pred_region
          _
        $region28: #{tpu_custom_call.1} parent=11 // pred_fallthru
          _
        // Predicated region
        $region29: #{tpu_custom_call.1} parent=11 // pred_check
          %p222 = pneg %p148
        $region30: #{tpu_custom_call.1} parent=11 // pred_check_branch
          %224 = sbr.rel (%p222) target = $region32
        $region31: #{tpu_custom_call.1} parent=11 // pred_region
          %s226 = ssub.s32 1024, 1024
          %227 = vsyncadd [#allocation3], %s226
          %s228 = sshll.u32 [#allocation2], 4
          %s229 = int_to_ptr.vmem [resolvable:$true] %s228
          %234 = dma.hbm_to_vmem [thread:$0]  %s5, 1024, %s229, [#allocation3], 64, 64, 4
        $region32: #{tpu_custom_call.1} parent=11 // pred_fallthru
          _
        // Predicated region
        $region33: #{tpu_custom_call.1} parent=11 // pred_check
          %p235 = pneg %p169
        $region34: #{tpu_custom_call.1} parent=11 // pred_check_branch
          %237 = sbr.rel (%p235) target = $region36
        $region35: #{tpu_custom_call.1} parent=11 // pred_region
          _
        $region36: #{tpu_custom_call.1} parent=11 // pred_fallthru
          _
      $region12: #{tpu_custom_call.1} parent=5 // pred_fallthru
        _
      %p238 = scmp.lt.s32.totalorder %s17, 3
      // Predicated region
      $region37: #{tpu_custom_call.1} parent=5 // pred_check
        %p239 = pneg %p238
      $region38: #{tpu_custom_call.1} parent=5 // pred_check_branch
        %241 = sbr.rel (%p239) target = $region40
      $region39: #{tpu_custom_call.1} parent=5 // pred_region
        // Predicated region
        $region41: #{tpu_custom_call.1} parent=39 // pred_check
          %p242 = pneg %p37
        $region42: #{tpu_custom_call.1} parent=39 // pred_check_branch
          %244 = sbr.rel (%p242) target = $region44
        $region43: #{tpu_custom_call.1} parent=39 // pred_region
          %p245 = scmp.lt.s32.totalorder %s17, 2
          %s246 = scalar_select %p245, %s17, 2
          %s247 = smul.addr %s246, 8
          %s248 = scalar_lea.vmem %s0, %s247
        $region44: #{tpu_custom_call.1} parent=39 // pred_fallthru
          _
      $region40: #{tpu_custom_call.1} parent=5 // pred_fallthru
        _
      %p249 = scmp.le.s32.totalorder 1, %s17
      %p250 = scmp.lt.s32.totalorder %s17, 4
      %p251 = pnand %p249, %p250
      %p252 = pneg %p251
      // Predicated region
      $region45: #{tpu_custom_call.1} parent=5 // pred_check
        _
      $region46: #{tpu_custom_call.1} parent=5 // pred_check_branch
        %254 = sbr.rel (%p251) target = $region48
      $region47: #{tpu_custom_call.1} parent=5 // pred_region
        %s255 = ssub.s32 %s17, 1
        // Predicated region
        $region49: #{tpu_custom_call.1} parent=47 // pred_check
          %p256 = pneg %p148
        $region50: #{tpu_custom_call.1} parent=47 // pred_check_branch
          %258 = sbr.rel (%p256) target = $region52
        $region51: #{tpu_custom_call.1} parent=47 // pred_region
          %259 = dma.done [#allocation3], 1024
        $region52: #{tpu_custom_call.1} parent=47 // pred_fallthru
          _
        %p260 = scmp.lt.s32.totalorder %s22, 2
        %s261 = scalar_select %p260, %s22, 2
        %s262 = smul.addr %s261, 8
        %s263 = scalar_lea.vmem %s0, %s262
        %p264 = pneg %p43
        %p265 = pneg %p40
        %p266 = pneg %p64
        %p267 = pneg %p61
        %p268 = pneg %p85
        %p269 = pneg %p82
        %p270 = pneg %p106
        %p271 = pneg %p103
        %p272 = pneg %p127
        %p273 = pneg %p124
        %p274 = pneg %p148
        %p275 = pneg %p145
        %p276 = pneg %p169
        %p277 = pneg %p166
        %p278 = pneg %p195
        %p279 = pneg %p192
        %s280 = sand.u32 %s182, 1
        %s281 = scalar_lea.sflag [#allocation4], %s280
        %s282 = sand.u32 %s182, 1
        %s283 = smul.addr %s282, 8
        %s284 = scalar_lea.vmem [#allocation5], %s283
        %p285 = scmp.lt.s32.totalorder %s22, 2
        %s286 = scalar_select %p285, %s22, 2
        %s287 = smul.addr %s286, 8
        %s288 = scalar_lea.vmem %s0, %s287
        %v290 = vld [vmem:[%s288] sm:$0xff]
        %v291 = vld [vmem:[%s1] sm:$0x1]
        %293 = vset.pattern.permute.xlu0 0
        %294 = vperm.xlu0 %293, %v290
        %v295 = vpop.permute.xlu0 %294
        %v298 = vlaneseq
        %v299 = vshrl.u32 %v298, 7
        %v300 = vsub.s32 0, %v299
        %v301 = vrot.slane %v291, %v300
        %v303 = vmul.f32 %v295, %v301
        %v304 = vand.u32 2147483647, %v303
        %vm305 = vcmp.le.f32.partialorder %v304, 0.7853982
        %vm306 = vcmp.lt.s32.totalorder %v303, 0
        %v307 = vand.u32 %v303, 2139095040
        %v308 = vshrl.u32 %v307, 23
        %v309 = vsub.s32 %v308, 127
        %v310 = vand.u32 2147483647, %v303
        %v311 = vand.u32 %v310, 8388607
        %v312 = vor.u32 %v311, 8388608
        %v313 = vsub.s32 0, %v312
        %v314 = vadd.s32 %v309, 1
        %vm315 = vcmp.gt.s32.totalorder %v314, 0
        %v316 = vsel %vm315, %v314, 0
        %v317 = vshrl.u32 %v316, 5
        %v318 = vand.u32 %v316, 31
        %v319 = vsub.s32 32, %v318
        %v320 = vshrl.u32 683565275, %v319
        %v321 = vshll.u32 683565275, %v318
        %v322 = vshrl.u32 2475754826, %v319
        %v323 = vor.u32 %v321, %v322
        %v324 = vshll.u32 2475754826, %v318
        %v325 = vshrl.u32 2131351028, %v319
        %v326 = vor.u32 %v324, %v325
        %v327 = vshll.u32 2131351028, %v318
        %v328 = vshrl.u32 2102212464, %v319
        %v329 = vor.u32 %v327, %v328
        %v330 = vshll.u32 2102212464, %v318
        %v331 = vshrl.u32 920167782, %v319
        %v332 = vor.u32 %v330, %v331
        %v333 = vshll.u32 920167782, %v318
        %v334 = vshrl.u32 1326507024, %v319
        %v335 = vor.u32 %v333, %v334
        %vm336 = vcmp.lt.s32.totalorder %v317, 1
        %vm337 = vcmp.lt.s32.totalorder %v317, 2
        %vm338 = vcmp.lt.s32.totalorder %v317, 3
        %vm339 = vcmp.lt.s32.totalorder %v317, 4
        %v340 = vsel %vm336, %v320, %v323
        %v341 = vsel %vm339, %v329, 2102212464
        %v342 = vsel %vm338, %v326, %v341
        %v343 = vsel %vm337, %v340, %v342
        %v344 = vsel %vm336, %v323, %v326
        %v345 = vsel %vm339, %v332, 920167782
        %v346 = vsel %vm338, %v329, %v345
        %v347 = vsel %vm337, %v344, %v346
        %v348 = vsel %vm336, %v326, %v329
        %v349 = vsel %vm339, %v335, 1326507024
        %v350 = vsel %vm338, %v332, %v349
        %v351 = vsel %vm337, %v348, %v350
        %v352 = vshll.u32 %v312, 8
        %v353 = vmul.u32.u64.compose %v352, %v351
        %v354 = vextract.low.u32 %v353
        %v355 = vextract.high.u32 %v353
        %v356 = vmul.u32.u64.compose %v352, %v347
        %v357 = vextract.low.u32 %v356
        %v358 = vextract.high.u32 %v356
        %v359 = vmul.u32 %v352, %v343
        %v360 = vadd.s32 %v355, %v357
        %vm361 = vc.u32 %v355, %v357
        %v362 = vadd.s32 %v358, 1
        %v363 = vsel %vm361, %v362, %v358
        %v364 = vadd.s32 %v359, %v363
        %v365 = vadd.s32 %v364, 536870912
        %v366 = vshrl.u32 %v365, 30
        %v367 = vshll.u32 %v366, 30
        %v368 = vsub.s32 %v364, %v367
        %vm369 = vcmp.lt.s32.totalorder %v368, 0
        %v370 = vsub.s32 0, %v368
        %v371 = vsel %vm369, %v370, %v368
        %v372 = vclz %v371
        %v373 = vsub.s32 %v372, 2
        %vm374 = vcmp.gt.s32.totalorder 0, %v373
        %v375 = vsel %vm374, 0, %v373
        %v376 = vsub.s32 32, %v375
        %v377 = vshll.u32 %v368, %v375
        %v378 = vshrl.u32 %v360, %v376
        %v379 = vor.u32 %v377, %v378
        %v380 = vsub.s32 4294967266, %v375
        %v381 = vadd.s32 %v380, 127
        %v382 = vshll.u32 %v381, 23
        %v383 = vor.u32 4788187, %v382
        %v384 = vand.u32 2147483647, %v383
        %v386 = vcvt.s32.f32 %v379
        %v387 = vmul.f32 %v386, %v384
        %v388 = vxor.u32 %v387, 2147483648
        %v389 = vsel %vm306, %v388, %v387
        %v390 = vsub.s32 4, %v366
        %v391 = vsel %vm306, %v390, %v366
        %v392 = vsel %vm305, %v303, %v389
        %v393 = vsel %vm305, 0, %v391
        %v394 = vcosq.f32.pop %v392
        %v395 = vsinq.f32.pop %v392
        %vm396 = vweird.f32 %v303
        %v397 = vadd.s32 %v393, 3
        %v398 = vand.u32 %v397, 3
        %vm399 = vcmp.lt.s32.totalorder %v398, 2
        %vm400 = vcmp.eq.s32.totalorder %v398, 0
        %v401 = vxor.u32 %v395, 2147483648
        %v402 = vsel %vm400, %v394, %v401
        %vm403 = vcmp.eq.s32.totalorder %v398, 2
        %v404 = vxor.u32 %v394, 2147483648
        %v405 = vsel %vm403, %v404, %v395
        %v406 = vsel %vm399, %v402, %v405
        %v407 = vsel %vm396, nan, %v406
        %v408 = vand.u32 2147483647, %v303
        %vm409 = vcmp.le.f32.partialorder %v408, 0.7853982
        %vm410 = vcmp.lt.s32.totalorder %v303, 0
        %v411 = vand.u32 %v303, 2139095040
        %v412 = vshrl.u32 %v411, 23
        %v413 = vsub.s32 %v412, 127
        %v414 = vand.u32 2147483647, %v303
        %v415 = vand.u32 %v414, 8388607
        %v416 = vor.u32 %v415, 8388608
        %v417 = vsub.s32 0, %v416
        %v418 = vadd.s32 %v413, 1
        %vm419 = vcmp.gt.s32.totalorder %v418, 0
        %v420 = vsel %vm419, %v418, 0
        %v421 = vshrl.u32 %v420, 5
        %v422 = vand.u32 %v420, 31
        %v423 = vsub.s32 32, %v422
        %v424 = vshrl.u32 683565275, %v423
        %v425 = vshll.u32 683565275, %v422
        %v426 = vshrl.u32 2475754826, %v423
        %v427 = vor.u32 %v425, %v426
        %v428 = vshll.u32 2475754826, %v422
        %v429 = vshrl.u32 2131351028, %v423
        %v430 = vor.u32 %v428, %v429
        %v431 = vshll.u32 2131351028, %v422
        %v432 = vshrl.u32 2102212464, %v423
        %v433 = vor.u32 %v431, %v432
        %v434 = vshll.u32 2102212464, %v422
        %v435 = vshrl.u32 920167782, %v423
        %v436 = vor.u32 %v434, %v435
        %v437 = vshll.u32 920167782, %v422
        %v438 = vshrl.u32 1326507024, %v423
        %v439 = vor.u32 %v437, %v438
        %vm440 = vcmp.lt.s32.totalorder %v421, 1
        %vm441 = vcmp.lt.s32.totalorder %v421, 2
        %vm442 = vcmp.lt.s32.totalorder %v421, 3
        %vm443 = vcmp.lt.s32.totalorder %v421, 4
        %v444 = vsel %vm440, %v424, %v427
        %v445 = vsel %vm443, %v433, 2102212464
        %v446 = vsel %vm442, %v430, %v445
        %v447 = vsel %vm441, %v444, %v446
        %v448 = vsel %vm440, %v427, %v430
        %v449 = vsel %vm443, %v436, 920167782
        %v450 = vsel %vm442, %v433, %v449
        %v451 = vsel %vm441, %v448, %v450
        %v452 = vsel %vm440, %v430, %v433
        %v453 = vsel %vm443, %v439, 1326507024
        %v454 = vsel %vm442, %v436, %v453
        %v455 = vsel %vm441, %v452, %v454
        %v456 = vshll.u32 %v416, 8
        %v457 = vmul.u32.u64.compose %v456, %v455
        %v458 = vextract.low.u32 %v457
        %v459 = vextract.high.u32 %v457
        %v460 = vmul.u32.u64.compose %v456, %v451
        %v461 = vextract.low.u32 %v460
        %v462 = vextract.high.u32 %v460
        %v463 = vmul.u32 %v456, %v447
        %v464 = vadd.s32 %v459, %v461
        %vm465 = vc.u32 %v459, %v461
        %v466 = vadd.s32 %v462, 1
        %v467 = vsel %vm465, %v466, %v462
        %v468 = vadd.s32 %v463, %v467
        %v469 = vadd.s32 %v468, 536870912
        %v470 = vshrl.u32 %v469, 30
        %v471 = vshll.u32 %v470, 30
        %v472 = vsub.s32 %v468, %v471
        %vm473 = vcmp.lt.s32.totalorder %v472, 0
        %v474 = vsub.s32 0, %v472
        %v475 = vsel %vm473, %v474, %v472
        %v476 = vclz %v475
        %v477 = vsub.s32 %v476, 2
        %vm478 = vcmp.gt.s32.totalorder 0, %v477
        %v479 = vsel %vm478, 0, %v477
        %v480 = vsub.s32 32, %v479
        %v481 = vshll.u32 %v472, %v479
        %v482 = vshrl.u32 %v464, %v480
        %v483 = vor.u32 %v481, %v482
        %v484 = vsub.s32 4294967266, %v479
        %v485 = vadd.s32 %v484, 127
        %v486 = vshll.u32 %v485, 23
        %v487 = vor.u32 4788187, %v486
        %v488 = vand.u32 2147483647, %v487
        %v490 = vcvt.s32.f32 %v483
        %v491 = vmul.f32 %v490, %v488
        %v492 = vxor.u32 %v491, 2147483648
        %v493 = vsel %vm410, %v492, %v491
        %v494 = vsub.s32 4, %v470
        %v495 = vsel %vm410, %v494, %v470
        %v496 = vsel %vm409, %v303, %v493
        %v497 = vsel %vm409, 0, %v495
        %v498 = vcosq.f32.pop %v496
        %v499 = vsinq.f32.pop %v496
        %vm500 = vweird.f32 %v303
        %v501 = vand.u32 %v497, 3
        %vm502 = vcmp.lt.s32.totalorder %v501, 2
        %vm503 = vcmp.eq.s32.totalorder %v501, 0
        %v504 = vxor.u32 %v499, 2147483648
        %v505 = vsel %vm503, %v498, %v504
        %vm506 = vcmp.eq.s32.totalorder %v501, 2
        %v507 = vxor.u32 %v498, 2147483648
        %v508 = vsel %vm506, %v507, %v499
        %v509 = vsel %vm502, %v505, %v508
        %v510 = vsel %vm500, nan, %v509
        %v511 = vpack.c.bf16 %v407, %v407
        %v512 = vld [vmem:[%s2] sm:$0xf]
        %v513 = vld [vmem:[%s2 + $0x4] sm:$0xf]
        %v514 = vpack.c.bf16 %v510, %v510
        %v515 = vld [vmem:[%s3] sm:$0xf]
        %v516 = vld [vmem:[%s3 + $0x4] sm:$0xf]
        %v519 = vunpack.c.l.b16 %v515
        %v520 = vunpack.c.l.b16 %v516
        %v521 = vpack.c.b16 %v520, %v519
        %vm523 = vcmask 130048
        %v525 = vsel %vm523, %v514, 0
        %527 = vmatprep.subr.bf16.mxu0 0
        %528 = vmatpush1.bf16.msra.mxu0 %v521
        %529 = vmatprep.subr.bf16.mxu0 0
        %530 = vmatpush1.bf16.msra.mxu0 0
        %531 = vmatprep.subr.bf16.mxu0 0
        %532 = vmatpush1.bf16.msra.mxu0 0
        %533 = vmatprep.subr.bf16.mxu0 0
        %534 = vmatpush1.bf16.msra.mxu0 0
        %535 = vmatprep.subr.bf16.mxu0 0
        %536 = vmatpush1.bf16.msra.mxu0 0
        %537 = vmatprep.subr.bf16.mxu0 0
        %538 = vmatpush1.bf16.msra.mxu0 0
        %539 = vmatprep.subr.bf16.mxu0 0
        %540 = vmatpush1.bf16.msra.mxu0 0
        %541 = vmatprep.subr.bf16.mxu0 0
        %542 = vmatpush1.bf16.msra.mxu0 0
        %543 = vmatprep.subr.bf16.mxu0 0
        %544 = vmatpush1.bf16.msra.mxu0 0
        %545 = vmatprep.subr.bf16.mxu0 0
        %546 = vmatpush1.bf16.msra.mxu0 0
        %547 = vmatprep.subr.bf16.mxu0 0
        %548 = vmatpush1.bf16.msra.mxu0 0
        %549 = vmatprep.subr.bf16.mxu0 0
        %550 = vmatpush1.bf16.msra.mxu0 0
        %551 = vmatprep.subr.bf16.mxu0 0
        %552 = vmatpush1.bf16.msra.mxu0 0
        %553 = vmatprep.subr.bf16.mxu0 0
        %554 = vmatpush1.bf16.msra.mxu0 0
        %555 = vmatprep.subr.bf16.mxu0 0
        %556 = vmatpush1.bf16.msra.mxu0 0
        %557 = vmatprep.subr.bf16.mxu0 0
        %558 = vmatpush1.bf16.msra.mxu0 0
        %559 = vmatprep.mubr.bf16.mxu0 0
        %560 = vmatmul.mubr.bf16.gmra.mrb[0].mxu0 %v525
        %v561 = vpop.f32.mrb[0].mxu0
        %v562 = vadd.f32 0.0, %v561
        %v563 = vpop.f32.mrb[0].mxu0
        %v564 = vpop.f32.mrb[0].mxu0
        %v565 = vpop.f32.mrb[0].mxu0
        %566 = vdwg.mxu0
        %v569 = vunpack.c.l.b16 %v512
        %v570 = vunpack.c.l.b16 %v513
        %v571 = vpack.c.b16 %v570, %v569
        %v574 = vsel %vm523, %v511, 0
        %576 = vmatprep.subr.bf16.mxu0 0
        %577 = vmatpush1.bf16.msra.mxu0 %v571
        %578 = vmatprep.subr.bf16.mxu0 0
        %579 = vmatpush1.bf16.msra.mxu0 0
        %580 = vmatprep.subr.bf16.mxu0 0
        %581 = vmatpush1.bf16.msra.mxu0 0
        %582 = vmatprep.subr.bf16.mxu0 0
        %583 = vmatpush1.bf16.msra.mxu0 0
        %584 = vmatprep.subr.bf16.mxu0 0
        %585 = vmatpush1.bf16.msra.mxu0 0
        %586 = vmatprep.subr.bf16.mxu0 0
        %587 = vmatpush1.bf16.msra.mxu0 0
        %588 = vmatprep.subr.bf16.mxu0 0
        %589 = vmatpush1.bf16.msra.mxu0 0
        %590 = vmatprep.subr.bf16.mxu0 0
        %591 = vmatpush1.bf16.msra.mxu0 0
        %592 = vmatprep.subr.bf16.mxu0 0
        %593 = vmatpush1.bf16.msra.mxu0 0
        %594 = vmatprep.subr.bf16.mxu0 0
        %595 = vmatpush1.bf16.msra.mxu0 0
        %596 = vmatprep.subr.bf16.mxu0 0
        %597 = vmatpush1.bf16.msra.mxu0 0
        %598 = vmatprep.subr.bf16.mxu0 0
        %599 = vmatpush1.bf16.msra.mxu0 0
        %600 = vmatprep.subr.bf16.mxu0 0
        %601 = vmatpush1.bf16.msra.mxu0 0
        %602 = vmatprep.subr.bf16.mxu0 0
        %603 = vmatpush1.bf16.msra.mxu0 0
        %604 = vmatprep.subr.bf16.mxu0 0
        %605 = vmatpush1.bf16.msra.mxu0 0
        %606 = vmatprep.subr.bf16.mxu0 0
        %607 = vmatpush1.bf16.msra.mxu0 0
        %608 = vmatprep.mubr.bf16.mxu0 0
        %609 = vmatmul.mubr.bf16.gmra.mrb[0].mxu0 %v574
        %v610 = vpop.f32.mrb[0].mxu0
        %v611 = vadd.f32 %v562, %v610
        %v612 = vpop.f32.mrb[0].mxu0
        %v613 = vpop.f32.mrb[0].mxu0
        %v614 = vpop.f32.mrb[0].mxu0
        %615 = vdwg.mxu0
        %v616 = vld [vmem:[%s4] sm:$0x1]
        %v618 = vlaneseq
        %v619 = vshrl.u32 %v618, 7
        %v620 = vsub.s32 0, %v619
        %v621 = vrot.slane %v616, %v620
        %v623 = vadd.f32 %v611, %v621
        %v624 = vsub.f32 0.0, %v623
        %v625 = vmul.f32 %v624, 1.442695
        %v626 = vpow.pop %v625
        %v627 = vadd.f32 %v626, 1.0
        %v628 = vrcp.pop %v627
        %v629 = vmul.f32 %v623, %v628
        %v630 = vpack.c.bf16 %v629, %v629
        %v631 = vld [vmem:[#allocation2] sm:$0xf]
        %v632 = vld [vmem:[#allocation2 + $0x4] sm:$0xf]
        %v633 = vld [vmem:[#allocation2 + $0x8] sm:$0xf]
        %v634 = vld [vmem:[#allocation2 + $0xc] sm:$0xf]
        %v635 = vld [vmem:[#allocation2 + $0x10] sm:$0xf]
        %v636 = vld [vmem:[#allocation2 + $0x14] sm:$0xf]
        %v637 = vld [vmem:[#allocation2 + $0x18] sm:$0xf]
        %v638 = vld [vmem:[#allocation2 + $0x1c] sm:$0xf]
        %v639 = vld [vmem:[#allocation2 + $0x20] sm:$0xf]
        %v640 = vld [vmem:[#allocation2 + $0x24] sm:$0xf]
        %v641 = vld [vmem:[#allocation2 + $0x28] sm:$0xf]
        %v642 = vld [vmem:[#allocation2 + $0x2c] sm:$0xf]
        %v643 = vld [vmem:[#allocation2 + $0x30] sm:$0xf]
        %v644 = vld [vmem:[#allocation2 + $0x34] sm:$0xf]
        %v645 = vld [vmem:[#allocation2 + $0x38] sm:$0xf]
        %v646 = vld [vmem:[#allocation2 + $0x3c] sm:$0xf]
        %v647 = vld [vmem:[%s6] sm:$0x1]
        %v649 = vlaneseq
        %v650 = vshrl.u32 %v649, 7
        %v651 = vsub.s32 0, %v650
        %v652 = vrot.slane %v647, %v651
        %v670 = vunpack.c.l.b16 %v631
        %v671 = vunpack.c.l.b16 %v632
        %v672 = vunpack.c.l.b16 %v633
        %v673 = vunpack.c.l.b16 %v634
        %v674 = vunpack.c.l.b16 %v635
        %v675 = vunpack.c.l.b16 %v636
        %v676 = vunpack.c.l.b16 %v637
        %v677 = vunpack.c.l.b16 %v638
        %v678 = vunpack.c.l.b16 %v639
        %v679 = vunpack.c.l.b16 %v640
        %v680 = vunpack.c.l.b16 %v641
        %v681 = vunpack.c.l.b16 %v642
        %v682 = vunpack.c.l.b16 %v643
        %v683 = vunpack.c.l.b16 %v644
        %v684 = vunpack.c.l.b16 %v645
        %v685 = vunpack.c.l.b16 %v646
        %v686 = vpack.c.b16 %v671, %v670
        %v687 = vpack.c.b16 %v673, %v672
        %v688 = vpack.c.b16 %v675, %v674
        %v689 = vpack.c.b16 %v677, %v676
        %v690 = vpack.c.b16 %v679, %v678
        %v691 = vpack.c.b16 %v681, %v680
        %v692 = vpack.c.b16 %v683, %v682
        %v693 = vpack.c.b16 %v685, %v684
        %702 = vmatprep.subr.bf16.mxu0 0
        %703 = vmatpush1.bf16.msra.mxu0 %v686
        %704 = vmatprep.subr.bf16.mxu0 0
        %705 = vmatpush1.bf16.msra.mxu0 %v687
        %706 = vmatprep.subr.bf16.mxu0 0
        %707 = vmatpush1.bf16.msra.mxu0 %v688
        %708 = vmatprep.subr.bf16.mxu0 0
        %709 = vmatpush1.bf16.msra.mxu0 %v689
        %710 = vmatprep.subr.bf16.mxu0 0
        %711 = vmatpush1.bf16.msra.mxu0 %v690
        %712 = vmatprep.subr.bf16.mxu0 0
        %713 = vmatpush1.bf16.msra.mxu0 %v691
        %714 = vmatprep.subr.bf16.mxu0 0
        %715 = vmatpush1.bf16.msra.mxu0 %v692
        %716 = vmatprep.subr.bf16.mxu0 0
        %717 = vmatpush1.bf16.msra.mxu0 %v693
        %718 = vmatprep.subr.bf16.mxu0 0
        %719 = vmatpush1.bf16.msra.mxu0 0
        %720 = vmatprep.subr.bf16.mxu0 0
        %721 = vmatpush1.bf16.msra.mxu0 0
        %722 = vmatprep.subr.bf16.mxu0 0
        %723 = vmatpush1.bf16.msra.mxu0 0
        %724 = vmatprep.subr.bf16.mxu0 0
        %725 = vmatpush1.bf16.msra.mxu0 0
        %726 = vmatprep.subr.bf16.mxu0 0
        %727 = vmatpush1.bf16.msra.mxu0 0
        %728 = vmatprep.subr.bf16.mxu0 0
        %729 = vmatpush1.bf16.msra.mxu0 0
        %730 = vmatprep.subr.bf16.mxu0 0
        %731 = vmatpush1.bf16.msra.mxu0 0
        %732 = vmatprep.subr.bf16.mxu0 0
        %733 = vmatpush1.bf16.msra.mxu0 0
        %734 = vmatprep.mubr.bf16.mxu0 0
        %735 = vmatmul.mubr.bf16.gmra.mrb[0].mxu0 %v630
        %v736 = vpop.f32.mrb[0].mxu0
        %v737 = vadd.f32 %v652, %v736
        %v738 = vpop.f32.mrb[0].mxu0
        %v739 = vpop.f32.mrb[0].mxu0
        %v740 = vpop.f32.mrb[0].mxu0
        %741 = vdwg.mxu0
        %742 = vst [vmem:[%s284] sm:$0xff] %v737
        %s743 = sand.u32 %s182, 1
        %s744 = scalar_lea.sflag [#allocation4], %s743
        %s745 = sand.u32 %s182, 1
        %s746 = smul.addr %s745, 8
        %s747 = scalar_lea.vmem [#allocation5], %s746
        // Predicated region
        $region53: #{tpu_custom_call.1} parent=47 // pred_check
          %p748 = pneg %p192
        $region54: #{tpu_custom_call.1} parent=47 // pred_check_branch
          %750 = sbr.rel (%p748) target = $region56
        $region55: #{tpu_custom_call.1} parent=47 // pred_region
          %s752 = ssub.s32 128, 128
          %753 = vsyncadd %s744, %s752
          %s754 = smul.addr %s22, 128
          %s755 = scalar_lea.hbm %s7, %s754
          %s757 = sshll.u32 %s747, 4
          %s758 = int_to_ptr.vmem [resolvable:$true] %s757
          %760 = dma.vmem_to_hbm [thread:$0]  %s758, 128, %s755, %s744
        $region56: #{tpu_custom_call.1} parent=47 // pred_fallthru
          _
      $region48: #{tpu_custom_call.1} parent=5 // pred_fallthru
        _
      %p761 = scmp.le.s32.totalorder 2, %s17
      // Predicated region
      $region57: #{tpu_custom_call.1} parent=5 // pred_check
        %p762 = pneg %p761
      $region58: #{tpu_custom_call.1} parent=5 // pred_check_branch
        %764 = sbr.rel (%p762) target = $region60
      $region59: #{tpu_custom_call.1} parent=5 // pred_region
        %s765 = ssub.s32 %s17, 2
        // Predicated region
        $region61: #{tpu_custom_call.1} parent=59 // pred_check
          %p766 = pneg %p198
        $region62: #{tpu_custom_call.1} parent=59 // pred_check_branch
          %768 = sbr.rel (%p766) target = $region64
        $region63: #{tpu_custom_call.1} parent=59 // pred_region
          %s769 = sand.u32 %s183, 1
          %s770 = scalar_lea.sflag [#allocation4], %s769
          %s771 = sand.u32 %s183, 1
          %s772 = smul.addr %s771, 8
          %s773 = scalar_lea.vmem [#allocation5], %s772
          %774 = dma.done %s770, 128
        $region64: #{tpu_custom_call.1} parent=59 // pred_fallthru
          _
      $region60: #{tpu_custom_call.1} parent=5 // pred_fallthru
        _
    $region6: #{tpu_custom_call.1} parent=1 // loop_footer
      %s21 = sadd.s32 1, %s17
    $region7: #{tpu_custom_call.1} parent=1 // loop_footer_branch
      %16 = sbr.rel target = $region3
    $region8: #{tpu_custom_call.1} parent=1 // loop_exit
      _
    %775 = vsyncpa [#allocation3], 1
    %s776 = scalar_lea.sflag [#allocation3], 1
    %777 = vsyncpa %s776, 1
    %778 = vsyncpa [#allocation4], 1
    %s779 = scalar_lea.sflag [#allocation4], 1
    %780 = vsyncpa %s779, 1

</llo_original>
